<compile_context>
chip_gen: v7x
topology: tpu7x:2x2x1
jax: 0.10.0
libtpu: 0.0.40
codegen_flags: <defaults>
</compile_context>

<pallas_src>
import functools

import jax
import jax.numpy as jnp
from jax.experimental import pallas as pl
from jax.experimental.pallas import tpu as pltpu


# ----------------------------------------------------------------------------
# One-time lazy probe of pltpu.roll's rotation direction so the in-kernel
# pair swap is correct regardless of the backend's rotate convention.
# ----------------------------------------------------------------------------
_ROLL_NP_CONVENTION = None


def _roll_is_np_convention() -> bool:
    """True iff pltpu.roll(x, 1, axis)[k] == x[k - 1] (numpy roll semantics)."""
    global _ROLL_NP_CONVENTION
    if _ROLL_NP_CONVENTION is None:
        def probe(x_ref, o_ref):
            o_ref[...] = pltpu.roll(x_ref[...], 1, axis=1)

        x = jax.lax.broadcasted_iota(jnp.float32, (8, 128), 1)
        y = pl.pallas_call(
            probe, out_shape=jax.ShapeDtypeStruct((8, 128), jnp.float32)
        )(x)
        _ROLL_NP_CONVENTION = bool(jax.device_get(y[0, 0]) == 127.0)
    return _ROLL_NP_CONVENTION


# ----------------------------------------------------------------------------
# Kernel (shared by the flattened 3-D and per-head 4-D block layouts).
#   x_ref/o_ref: (1, ts, D)          with cos/sin (ts, D)        [flattened]
#             or (1, ts, n_h, h_d)   with cos/sin (ts, 1, h_d)   [per-head]
#   sin is sign-folded: -sin on even lanes, +sin on odd lanes.
# ----------------------------------------------------------------------------
def rope_kernel(x_ref, cos_ref, sin_ref, o_ref, *, np_roll: bool):
    x = x_ref[...].astype(jnp.float32)
    d = x.shape[-1]
    axis = x.ndim - 1

    # partner[k] = x[k+1] at even lanes, x[k-1] at odd lanes (pair swap).
    # Pairs are (2j, 2j+1), so roll wrap-around lanes are never selected.
    if np_roll:
        x_prev = pltpu.roll(x, 1, axis=axis)        # x_prev[k] = x[k-1]
        x_next = pltpu.roll(x, d - 1, axis=axis)    # x_next[k] = x[k+1]
    else:
        x_prev = pltpu.roll(x, d - 1, axis=axis)
        x_next = pltpu.roll(x, 1, axis=axis)

    # Hoisted lane-parity mask: single row, broadcast by the select.
    lane = jax.lax.broadcasted_iota(jnp.int32, (1,) * (x.ndim - 1) + (d,), axis)
    partner = jnp.where((lane & 1) == 0, x_next, x_prev)

    cos = cos_ref[...][None].astype(jnp.float32)    # broadcasts against x
    sin = sin_ref[...][None].astype(jnp.float32)
    o_ref[...] = (x * cos + partner * sin).astype(o_ref.dtype)


# ----------------------------------------------------------------------------
# Cached table construction (removes per-call table-build HBM traffic).
# ----------------------------------------------------------------------------
@functools.lru_cache(maxsize=64)
def _rope_tables(s: int, n_h: int, h_d: int, base: int,
                 table_dtype_name: str, per_head: bool, d_pad: int):
    dt = jnp.dtype(table_dtype_name)
    hh = h_d // 2
    theta = 1.0 / jnp.power(
        jnp.float32(base), jnp.arange(0, h_d, 2, dtype=jnp.float32)[:hh] / h_d)
    pos = jnp.arange(s, dtype=jnp.float32)
    ang = pos[:, None] * theta[None, :]                        # (s, hh)
    cos_hd = jnp.repeat(jnp.cos(ang), 2, axis=-1)              # (s, h_d)
    sin_hd = jnp.repeat(jnp.sin(ang), 2, axis=-1)              # (s, h_d)
    sign = jnp.tile(jnp.array([-1.0, 1.0], jnp.float32), (hh,))
    sin_hd = sin_hd * sign                                     # sign-folded

    if per_head:
        cos_t = cos_hd[:, None, :]                             # (s, 1, h_d)
        sin_t = sin_hd[:, None, :]
    else:
        d = n_h * h_d
        cos_t = jnp.tile(cos_hd, (1, n_h))                     # (s, d)
        sin_t = jnp.tile(sin_hd, (1, n_h))
        if d_pad > d:
            cos_t = jnp.pad(cos_t, ((0, 0), (0, d_pad - d)))
            sin_t = jnp.pad(sin_t, ((0, 0), (0, d_pad - d)))

    return cos_t.astype(dt), sin_t.astype(dt)


# ----------------------------------------------------------------------------
# Tile-size heuristic: account for the true per-step VMEM footprint.
# ----------------------------------------------------------------------------
def _round_down8(n: int) -> int:
    return max(8, (n // 8) * 8)


def _choose_seq_tile(s: int, b: int, x_row: int, tab_row: int,
                     x_itemsize: int, tab_itemsize: int,
                     vmem_budget_bytes: int = 24 << 20,
                     min_grid_steps: int = 4):
    # Per seq-row bytes, per pipeline step:
    #   x in + out blocks, double-buffered, in x.dtype
    #   cos + sin blocks, double-buffered, in table dtype
    #   ~5 f32 elementwise temporaries (upcast x, two rolls, partner, result)
    per_row = (2 * 2 * x_row * x_itemsize
               + 2 * 2 * tab_row * tab_itemsize
               + 5 * x_row * 4)
    if s < 8:
        return s, per_row * s
    ts = _round_down8(vmem_budget_bytes // per_row)
    ts = min(ts, _round_down8(s))
    # Keep a few grid steps so both v7x TensorCores get work and the DMA
    # pipeline has something to overlap.
    while ts > 8 and b * pl.cdiv(s, ts) < min_grid_steps:
        ts = _round_down8(ts // 2)
    return ts, per_row * ts


# ----------------------------------------------------------------------------
# Wrapper
# ----------------------------------------------------------------------------
def rope_pallas(x: jax.Array, base: int = 10000) -> jax.Array:
    """RoPE forward. x: (b, s, n_h, h_d) -> same shape and dtype."""
    b, s, n_h, h_d = x.shape
    assert h_d % 2 == 0, "head dim must be even"
    d = n_h * h_d

    # Half-precision tables only when x is already half precision
    # (precision trade-off comparable to the output cast); f32 otherwise.
    if x.dtype in (jnp.dtype(jnp.bfloat16), jnp.dtype(jnp.float16)):
        table_dtype = x.dtype
    else:
        table_dtype = jnp.dtype(jnp.float32)
    x_itemsize = jnp.dtype(x.dtype).itemsize
    tab_itemsize = jnp.dtype(table_dtype).itemsize

    # Per-head table layout (n_h x less table DMA) only when h_d keeps the
    # output stores lane-dense.
    per_head = (h_d % 128 == 0) and n_h > 1

    if per_head:
        d_pad = d
        x_in = x                                            # (b, s, n_h, h_d)
        x_row, tab_row = d, h_d
        x_block = lambda ts: (1, ts, n_h, h_d)
        tab_block = lambda ts: (ts, 1, h_d)
        x_index = lambda si, bi: (bi, si, 0, 0)
        tab_index = lambda si, bi: (si, 0, 0)
    else:
        d_pad = pl.cdiv(d, 128) * 128                       # lane-dense width
        x_in = x.reshape(b, s, d)                           # free view
        if d_pad != d:
            # TODO(synk): padding copies x once; acceptable guard path for
            # rare non-128-multiple feature widths (avoids masked vst.msk).
            x_in = jnp.pad(x_in, ((0, 0), (0, 0), (0, d_pad - d)))
        x_row, tab_row = d_pad, d_pad
        x_block = lambda ts: (1, ts, d_pad)
        tab_block = lambda ts: (ts, d_pad)
        x_index = lambda si, bi: (bi, si, 0)
        tab_index = lambda si, bi: (si, 0)

    cos_t, sin_t = _rope_tables(s, n_h, h_d, int(base),
                                jnp.dtype(table_dtype).name, per_head, d_pad)

    ts, est_vmem = _choose_seq_tile(s, b, x_row, tab_row,
                                    x_itemsize, tab_itemsize)
    grid = (pl.cdiv(s, ts), b)          # seq outer, batch inner => cos/sin
                                        # block index constant over the inner
                                        # loop, so Pallas skips re-DMA.
    vmem_limit = int(min(48 << 20, max(16 << 20, est_vmem * 5 // 4)))

    kernel = functools.partial(rope_kernel, np_roll=_roll_is_np_convention())

    out = pl.pallas_call(
        kernel,
        out_shape=jax.ShapeDtypeStruct(x_in.shape, x.dtype),
        grid_spec=pltpu.PrefetchScalarGridSpec(
            num_scalar_prefetch=0,
            grid=grid,
            in_specs=[
                pl.BlockSpec(x_block(ts), x_index),
                pl.BlockSpec(tab_block(ts), tab_index),
                pl.BlockSpec(tab_block(ts), tab_index),
            ],
            out_specs=pl.BlockSpec(x_block(ts), x_index),
        ),
        compiler_params=pltpu.CompilerParams(
            dimension_semantics=("parallel", "parallel"),
            vmem_limit_bytes=vmem_limit),
    )(x_in, cos_t, sin_t)

    if per_head:
        return out
    if d_pad != d:
        out = out[..., :d]
    return out.reshape(b, s, n_h, h_d)


# ----------------------------------------------------------------------------
# Pure-JAX reference mirroring the PyTorch forward exactly.
# ----------------------------------------------------------------------------
def rope_reference(x, base=10000):
    b, s, n_h, h_d = x.shape
    hh = h_d // 2
    theta = 1.0 / jnp.power(
        jnp.float32(base), jnp.arange(0, h_d, 2, dtype=jnp.float32)[:hh] / h_d)
    seq_idx = jnp.arange(s, dtype=jnp.float32)
    idx_theta = seq_idx[:, None] * theta[None, :]
    cache = jnp.stack([jnp.cos(idx_theta), jnp.sin(idx_theta)], axis=-1)  # (s, hh, 2)
    xshaped = x.astype(jnp.float32).reshape(b, s, n_h, hh, 2)
    rc = cache.reshape(1, s, 1, hh, 2)
    out = jnp.stack(
        [xshaped[..., 0] * rc[..., 0] - xshaped[..., 1] * rc[..., 1],
         xshaped[..., 1] * rc[..., 0] + xshaped[..., 0] * rc[..., 1]],
        axis=-1)
    return out.reshape(b, s, n_h, h_d).astype(x.dtype)


if __name__ == "__main__":
    key = jax.random.PRNGKey(0)
    b, s, n_h, h_d = 2, 8, 4, 32
    x = jax.random.normal(key, (b, s, n_h, h_d), dtype=jnp.float32)

    out = rope_pallas(x)
    jax.block_until_ready(out)

    ref = rope_reference(x)
    assert out.shape == x.shape and out.dtype == x.dtype
    assert jnp.allclose(out, ref, atol=1e-5, rtol=1e-5)

    print("KERNEL_OK")
</pallas_src>

<mosaic_0001>
module attributes {stable_mosaic.version = 11 : i64} {
  func.func @probe(%arg0: memref<8x128xf32, #tpu.memory_space<vmem>>, %arg1: memref<8x128xf32, #tpu.memory_space<vmem>>) attributes {dimension_semantics = [], scalar_prefetch = 0 : i64, scratch_operands = 0 : i64, tpu.core_type = #tpu.core_type<tc>} {
    %c0 = arith.constant 0 : index
    %c0_0 = arith.constant 0 : index
    %0 = vector.load %arg0[%c0, %c0_0] : memref<8x128xf32, #tpu.memory_space<vmem>>, vector<8x128xf32>
    %c1_i32 = arith.constant 1 : i32
    %1 = tpu.dynamic_rotate %0 by %c1_i32 dim 1 : vector<8x128xf32>, i32 -> vector<8x128xf32>
    %c0_1 = arith.constant 0 : index
    %c0_2 = arith.constant 0 : index
    %2 = vector.load %arg1[%c0_1, %c0_2] : memref<8x128xf32, #tpu.memory_space<vmem>>, vector<8x128xf32>
    tpu.vector_store %arg1[%c0_1, %c0_2], %1 {strides = array<i32>} : memref<8x128xf32, #tpu.memory_space<vmem>>, vector<8x128xf32>,
    return
  }
}

</mosaic_0001>

<llo_original>
// kernel: tpu_custom_call.1
$region0: #{tpu_custom_call.1}
  #allocation0 [shape = 'u32[]', space=smem, size = 0x4, offset = 0x4, fixed_abs, tag = 'smem constant byte address 0x4 - core index']
  #allocation1 [shape = 'u32[144,128]{1,0:T(1,128)}', space=vmem, size = 0x12000, scoped, tag = 'internal scratch']
  %s0 = inlined_call_operand.hbm [shape: f32[8,128], index: 0, kind: input, shape index: {}]
  %s1 = inlined_call_operand.hbm [shape: f32[8,128], index: 1, kind: output, shape index: {}]
  %s2 = sld [smem:[#allocation0]]
  $region18: #{tpu_custom_call.1} parent=0
    _
  %s4 = ssub.s32 1, %s2
  %s5 = scalar_select 0, %s4, %s2
  $region1: #{tpu_custom_call.1} parent=0
    #allocation2 [shape = 'u8[4096]{0}', space=vmem, size = 0x1000, scoped, tag = 'input window, operand 0, single buffered']
    #allocation3 [shape = 's32[1]{0}', space=sflag, size = 0x4, scoped, tag = 'scoped memory for tpu_custom_call.1']
    #allocation4 [shape = 's32[1]{0}', space=sflag, size = 0x4, scoped, tag = 'scoped memory for tpu_custom_call.1']
    #allocation5 [shape = 'u8[4096]{0}', space=vmem, size = 0x1000, scoped, tag = 'output window, operand 0, single buffered']
    %6 = vsyncpa [#allocation3], 0
    %7 = vsyncpa [#allocation4], 0
    // Predicated region
    $region2: #{tpu_custom_call.1} parent=1 // pred_check
      _
    $region3: #{tpu_custom_call.1} parent=1 // pred_check_branch
      %9 = sbr.rel (0) target = $region5
    $region4: #{tpu_custom_call.1} parent=1 // pred_region
      %s11 = ssub.s32 128, 128
      %12 = vsyncadd [#allocation3], %s11
      %s14 = sshll.u32 [#allocation2], 4
      %s15 = int_to_ptr.vmem [resolvable:$true] %s14
      %17 = dma.hbm_to_vmem [thread:$0]  %s0, 128, %s15, [#allocation3]
    $region5: #{tpu_custom_call.1} parent=1 // pred_fallthru
      _
    // Predicated region
    $region6: #{tpu_custom_call.1} parent=1 // pred_check
      _
    $region7: #{tpu_custom_call.1} parent=1 // pred_check_branch
      %19 = sbr.rel (0) target = $region9
    $region8: #{tpu_custom_call.1} parent=1 // pred_region
      %20 = dma.done [#allocation3], 128
    $region9: #{tpu_custom_call.1} parent=1 // pred_fallthru
      _
    %v21 = vld [vmem:[#allocation2] sm:$0xff]
    %22 = vrot.lane.b32.xlu0 %v21, 1
    %v23 = vpop.permute.xlu0 %22
    %24 = vst [vmem:[#allocation5] sm:$0xff] %v23
    // Predicated region
    $region10: #{tpu_custom_call.1} parent=1 // pred_check
      _
    $region11: #{tpu_custom_call.1} parent=1 // pred_check_branch
      %26 = sbr.rel (0) target = $region13
    $region12: #{tpu_custom_call.1} parent=1 // pred_region
      %s28 = ssub.s32 128, 128
      %29 = vsyncadd [#allocation4], %s28
      %s31 = sshll.u32 [#allocation5], 4
      %s32 = int_to_ptr.vmem [resolvable:$true] %s31
      %34 = dma.vmem_to_hbm [thread:$0]  %s32, 128, %s1, [#allocation4]
    $region13: #{tpu_custom_call.1} parent=1 // pred_fallthru
      _
    // Predicated region
    $region14: #{tpu_custom_call.1} parent=1 // pred_check
      _
    $region15: #{tpu_custom_call.1} parent=1 // pred_check_branch
      %36 = sbr.rel (0) target = $region17
    $region16: #{tpu_custom_call.1} parent=1 // pred_region
      %37 = dma.done [#allocation4], 128
    $region17: #{tpu_custom_call.1} parent=1 // pred_fallthru
      _
    %38 = vsyncpa [#allocation3], 1
    %39 = vsyncpa [#allocation4], 1

</llo_original>
